<compile_context>
chip_gen: v6e
topology: v6e:2x2x1
jax: 0.10.0
libtpu: 0.0.40
codegen_flags: <defaults>
</compile_context>

<pallas_src>
import functools

import jax
import jax.numpy as jnp
from jax.experimental import pallas as pl
from jax.experimental.pallas import tpu as pltpu


def _round_up(x: int, m: int) -> int:
    return ((x + m - 1) // m) * m


def qnetwork_kernel(x_ref, w1_ref, b1_ref, w2_ref, b2_ref, w3_ref, b3_ref, o_ref):
    """One batch tile: fused 3x (bf16 matmul, f32 accumulate, + bias) with ReLU."""
    # MXU operands in the (narrow) weight dtype; accumulation stays in f32.
    x = x_ref[...].astype(w1_ref.dtype)
    h1 = jnp.dot(x, w1_ref[...], preferred_element_type=jnp.float32) + b1_ref[...]
    h1 = jnp.maximum(h1, 0.0)  # f32 elementwise (safe on v5e: no bf16 VPU there)
    h2 = jnp.dot(h1.astype(w2_ref.dtype), w2_ref[...],
                 preferred_element_type=jnp.float32) + b2_ref[...]
    h2 = jnp.maximum(h2, 0.0)
    out = jnp.dot(h2.astype(w3_ref.dtype), w3_ref[...],
                  preferred_element_type=jnp.float32) + b3_ref[...]
    o_ref[...] = out.astype(o_ref.dtype)


@functools.partial(jax.jit, static_argnames=("batch_tile", "param_dtype"))
def qnetwork_forward(state, params, *, batch_tile=512, param_dtype=jnp.bfloat16):
    """Forward pass of QNetwork via a single fused Pallas kernel.

    `params = (w1, b1, w2, b2, w3, b3)` with weights stored as (in, out)
    (transposed vs. torch.nn.Linear) and biases as (1, out) rows.
    """
    w1, b1, w2, b2, w3, b3 = params
    B, state_dim = state.shape
    hidden_dim = w1.shape[1]
    action_dim = w3.shape[1]

    # ---- Batch tiling -------------------------------------------------------
    # Largest tile up to `batch_tile` (multiple of 8 sublanes). If that would
    # leave a single grid step but the batch is big enough, halve the tile so
    # the "parallel" batch axis can be sharded across v7x's two TensorCores.
    tile = min(batch_tile, _round_up(B, 8))
    if _round_up(B, tile) // tile < 2 and tile >= 16:
        tile = _round_up(pl.cdiv(tile, 2), 8)
    B_pad = _round_up(B, tile)
    grid = (B_pad // tile,)

    # ---- Lane-dense output --------------------------------------------------
    # Pad the action dimension up to a multiple of 128 so the output store is a
    # full-lane `vst` instead of a masked partial store. w3/b3 get zero columns.
    A_pad = _round_up(max(action_dim, 128), 128)

    if B_pad != B:
        state = jnp.pad(state, ((0, B_pad - B), (0, 0)))

    w1c = w1.astype(param_dtype)
    w2c = w2.astype(param_dtype)
    w3c = jnp.zeros((hidden_dim, A_pad), param_dtype).at[:, :action_dim].set(
        w3.astype(param_dtype))
    b1c = b1.astype(jnp.float32)
    b2c = b2.astype(jnp.float32)
    b3c = jnp.zeros((1, A_pad), jnp.float32).at[:, :action_dim].set(
        b3.astype(jnp.float32))

    # Resident (grid-constant) blocks: single buffer is enough — index_map never
    # changes, so there is nothing to overlap and no need to double the VMEM.
    def resident(shape):
        return pl.BlockSpec(shape, lambda i: (0,) * len(shape),
                            pipeline_mode=pl.Buffered(1))

    # ---- VMEM budget / cost hint -------------------------------------------
    w_item = jnp.dtype(param_dtype).itemsize
    weight_bytes = (w_item * (state_dim * hidden_dim
                              + hidden_dim * hidden_dim
                              + hidden_dim * A_pad)
                    + 4 * (hidden_dim + hidden_dim + A_pad))
    act_bytes = 4 * tile * (2 * state_dim      # x, double-buffered
                            + 2 * A_pad        # out, double-buffered
                            + 2 * hidden_dim)  # h1/h2 temporaries
    vmem_limit = int(1.5 * (weight_bytes + act_bytes)) + (1 << 20)
    vmem_limit = min(max(vmem_limit, 32 << 20), 64 << 20)  # v7x-safe ceiling

    cost = pl.CostEstimate(
        flops=2 * B_pad * (state_dim * hidden_dim
                           + hidden_dim * hidden_dim
                           + hidden_dim * A_pad),
        transcendentals=0,
        bytes_accessed=(B_pad * state_dim * 4 + weight_bytes + B_pad * A_pad * 4),
    )

    out = pl.pallas_call(
        qnetwork_kernel,
        out_shape=jax.ShapeDtypeStruct((B_pad, A_pad), jnp.float32),
        grid_spec=pl.GridSpec(
            grid=grid,
            in_specs=[
                pl.BlockSpec((tile, state_dim), lambda i: (i, 0)),
                resident((state_dim, hidden_dim)),
                resident((1, hidden_dim)),
                resident((hidden_dim, hidden_dim)),
                resident((1, hidden_dim)),
                resident((hidden_dim, A_pad)),
                resident((1, A_pad)),
            ],
            out_specs=pl.BlockSpec((tile, A_pad), lambda i: (i, 0)),
        ),
        compiler_params=pltpu.CompilerParams(
            dimension_semantics=("parallel",),
            vmem_limit_bytes=vmem_limit,
        ),
        cost_estimate=cost,
    )(state, w1c, b1c, w2c, b2c, w3c, b3c)

    # Drop batch padding and the lane padding of the action dimension.
    return out[:B, :action_dim]


def init_qnetwork_params(key, state_dim, action_dim, hidden_dim=256):
    """Init mimicking torch.nn.Linear defaults (uniform +-1/sqrt(fan_in)).

    Weights are returned transposed vs. PyTorch, i.e. shape (in, out).
    """
    keys = jax.random.split(key, 6)

    def linear(kw, kb, fan_in, fan_out):
        bound = 1.0 / jnp.sqrt(jnp.float32(fan_in))
        w = jax.random.uniform(kw, (fan_in, fan_out), jnp.float32, -bound, bound)
        b = jax.random.uniform(kb, (1, fan_out), jnp.float32, -bound, bound)
        return w, b

    w1, b1 = linear(keys[0], keys[1], state_dim, hidden_dim)
    w2, b2 = linear(keys[2], keys[3], hidden_dim, hidden_dim)
    w3, b3 = linear(keys[4], keys[5], hidden_dim, action_dim)
    return (w1, b1, w2, b2, w3, b3)


def qnetwork_reference(state, params, param_dtype=jnp.bfloat16):
    """Pure-JAX reference matching the kernel's bf16-operand / f32-accum math."""
    w1, b1, w2, b2, w3, b3 = params
    x = state.astype(param_dtype)
    h1 = jnp.maximum(
        jnp.dot(x, w1.astype(param_dtype), preferred_element_type=jnp.float32) + b1, 0.0)
    h2 = jnp.maximum(
        jnp.dot(h1.astype(param_dtype), w2.astype(param_dtype),
                preferred_element_type=jnp.float32) + b2, 0.0)
    return jnp.dot(h2.astype(param_dtype), w3.astype(param_dtype),
                   preferred_element_type=jnp.float32) + b3


if __name__ == "__main__":
    # Small shapes consistent with the module: batch=16, state_dim=16,
    # hidden_dim=32, action_dim=4. (hidden defaults to 256 in the real model;
    # kept small here for a quick check.)
    B, state_dim, hidden_dim, action_dim = 16, 16, 32, 4

    key = jax.random.PRNGKey(0)
    k_params, k_state = jax.random.split(key)

    params = init_qnetwork_params(k_params, state_dim, action_dim, hidden_dim)
    state = jax.random.normal(k_state, (B, state_dim), dtype=jnp.float32)

    out = qnetwork_forward(state, params)
    out = jax.block_until_ready(out)

    ref = qnetwork_reference(state, params)
    assert out.shape == (B, action_dim)
    assert jnp.allclose(out, ref, atol=1e-2, rtol=1e-2), "mismatch vs reference"

    print("KERNEL_OK")
</pallas_src>

<mosaic_0001>
module attributes {stable_mosaic.version = 11 : i64} {
  func.func @qnetwork_kernel(%arg0: i32, %arg1: memref<8x16xf32, #tpu.memory_space<vmem>>, %arg2: memref<16x32xbf16, #tpu.memory_space<vmem>>, %arg3: memref<1x32xf32, #tpu.memory_space<vmem>>, %arg4: memref<32x32xbf16, #tpu.memory_space<vmem>>, %arg5: memref<1x32xf32, #tpu.memory_space<vmem>>, %arg6: memref<32x128xbf16, #tpu.memory_space<vmem>>, %arg7: memref<1x128xf32, #tpu.memory_space<vmem>>, %arg8: memref<8x128xf32, #tpu.memory_space<vmem>>) attributes {dimension_semantics = [#tpu.dimension_semantics<parallel>], iteration_bounds = array<i64: 2>, scalar_prefetch = 0 : i64, scratch_operands = 0 : i64, tpu.core_type = #tpu.core_type<tc>, window_params = [{transform_indices = @transform_0, window_bounds = array<i64: 8, 16>}, {pipeline_mode = #tpu.pipeline_mode<synchronous>, transform_indices = @transform_1, window_bounds = array<i64: 16, 32>}, {pipeline_mode = #tpu.pipeline_mode<synchronous>, transform_indices = @transform_2, window_bounds = array<i64: 1, 32>}, {pipeline_mode = #tpu.pipeline_mode<synchronous>, transform_indices = @transform_3, window_bounds = array<i64: 32, 32>}, {pipeline_mode = #tpu.pipeline_mode<synchronous>, transform_indices = @transform_4, window_bounds = array<i64: 1, 32>}, {pipeline_mode = #tpu.pipeline_mode<synchronous>, transform_indices = @transform_5, window_bounds = array<i64: 32, 128>}, {pipeline_mode = #tpu.pipeline_mode<synchronous>, transform_indices = @transform_6, window_bounds = array<i64: 1, 128>}, {transform_indices = @transform_7, window_bounds = array<i64: 8, 128>}]} {
    %c0 = arith.constant 0 : index
    %c0_0 = arith.constant 0 : index
    %0 = vector.load %arg1[%c0, %c0_0] : memref<8x16xf32, #tpu.memory_space<vmem>>, vector<8x16xf32>
    %1 = arith.truncf %0 : vector<8x16xf32> to vector<8x16xbf16>
    %c0_1 = arith.constant 0 : index
    %c0_2 = arith.constant 0 : index
    %2 = vector.load %arg2[%c0_1, %c0_2] : memref<16x32xbf16, #tpu.memory_space<vmem>>, vector<16x32xbf16>
    %cst = arith.constant dense<0.000000e+00> : vector<8x32xf32>
    %3 = tpu.matmul %1, %2, %cst {dimension_numbers = #tpu.dot_dimension_numbers<[1], [0], [0], [1], [0, 0, 1, 1], [], []>} : vector<8x16xbf16>, vector<16x32xbf16>, vector<8x32xf32> -> vector<8x32xf32>
    %c0_3 = arith.constant 0 : index
    %c0_4 = arith.constant 0 : index
    %4 = vector.load %arg3[%c0_3, %c0_4] : memref<1x32xf32, #tpu.memory_space<vmem>>, vector<1x32xf32>
    %5 = vector.broadcast %4 : vector<1x32xf32> to vector<8x32xf32>
    %6 = arith.addf %3, %5 : vector<8x32xf32>
    %cst_5 = arith.constant 0.000000e+00 : f32
    %7 = vector.broadcast %cst_5 : f32 to vector<8x32xf32>
    %8 = arith.maximumf %6, %7 : vector<8x32xf32>
    %9 = arith.truncf %8 : vector<8x32xf32> to vector<8x32xbf16>
    %c0_6 = arith.constant 0 : index
    %c0_7 = arith.constant 0 : index
    %10 = vector.load %arg4[%c0_6, %c0_7] : memref<32x32xbf16, #tpu.memory_space<vmem>>, vector<32x32xbf16>
    %cst_8 = arith.constant dense<0.000000e+00> : vector<8x32xf32>
    %11 = tpu.matmul %9, %10, %cst_8 {dimension_numbers = #tpu.dot_dimension_numbers<[1], [0], [0], [1], [0, 0, 1, 1], [], []>} : vector<8x32xbf16>, vector<32x32xbf16>, vector<8x32xf32> -> vector<8x32xf32>
    %c0_9 = arith.constant 0 : index
    %c0_10 = arith.constant 0 : index
    %12 = vector.load %arg5[%c0_9, %c0_10] : memref<1x32xf32, #tpu.memory_space<vmem>>, vector<1x32xf32>
    %13 = vector.broadcast %12 : vector<1x32xf32> to vector<8x32xf32>
    %14 = arith.addf %11, %13 : vector<8x32xf32>
    %cst_11 = arith.constant 0.000000e+00 : f32
    %15 = vector.broadcast %cst_11 : f32 to vector<8x32xf32>
    %16 = arith.maximumf %14, %15 : vector<8x32xf32>
    %17 = arith.truncf %16 : vector<8x32xf32> to vector<8x32xbf16>
    %c0_12 = arith.constant 0 : index
    %c0_13 = arith.constant 0 : index
    %18 = vector.load %arg6[%c0_12, %c0_13] : memref<32x128xbf16, #tpu.memory_space<vmem>>, vector<32x128xbf16>
    %cst_14 = arith.constant dense<0.000000e+00> : vector<8x128xf32>
    %19 = tpu.matmul %17, %18, %cst_14 {dimension_numbers = #tpu.dot_dimension_numbers<[1], [0], [0], [1], [0, 0, 1, 1], [], []>} : vector<8x32xbf16>, vector<32x128xbf16>, vector<8x128xf32> -> vector<8x128xf32>
    %c0_15 = arith.constant 0 : index
    %c0_16 = arith.constant 0 : index
    %20 = vector.load %arg7[%c0_15, %c0_16] : memref<1x128xf32, #tpu.memory_space<vmem>>, vector<1x128xf32>
    %21 = vector.broadcast %20 : vector<1x128xf32> to vector<8x128xf32>
    %22 = arith.addf %19, %21 : vector<8x128xf32>
    %c0_17 = arith.constant 0 : index
    %c0_18 = arith.constant 0 : index
    %23 = vector.load %arg8[%c0_17, %c0_18] : memref<8x128xf32, #tpu.memory_space<vmem>>, vector<8x128xf32>
    tpu.vector_store %arg8[%c0_17, %c0_18], %22 {strides = array<i32>} : memref<8x128xf32, #tpu.memory_space<vmem>>, vector<8x128xf32>,
    return
  }
  func.func @transform_0(%arg0: i32) -> (i32, i32) {
    %c0_i32 = arith.constant 0 : i32
    %c0_i32_0 = arith.constant 0 : i32
    return %arg0, %c0_i32 : i32, i32
  }
  func.func @transform_1(%arg0: i32) -> (i32, i32) {
    %c0_i32 = arith.constant 0 : i32
    %c0_i32_0 = arith.constant 0 : i32
    %c0_i32_1 = arith.constant 0 : i32
    return %c0_i32, %c0_i32_0 : i32, i32
  }
  func.func @transform_2(%arg0: i32) -> (i32, i32) {
    %c0_i32 = arith.constant 0 : i32
    %c0_i32_0 = arith.constant 0 : i32
    %c0_i32_1 = arith.constant 0 : i32
    return %c0_i32, %c0_i32_0 : i32, i32
  }
  func.func @transform_3(%arg0: i32) -> (i32, i32) {
    %c0_i32 = arith.constant 0 : i32
    %c0_i32_0 = arith.constant 0 : i32
    %c0_i32_1 = arith.constant 0 : i32
    return %c0_i32, %c0_i32_0 : i32, i32
  }
  func.func @transform_4(%arg0: i32) -> (i32, i32) {
    %c0_i32 = arith.constant 0 : i32
    %c0_i32_0 = arith.constant 0 : i32
    %c0_i32_1 = arith.constant 0 : i32
    return %c0_i32, %c0_i32_0 : i32, i32
  }
  func.func @transform_5(%arg0: i32) -> (i32, i32) {
    %c0_i32 = arith.constant 0 : i32
    %c0_i32_0 = arith.constant 0 : i32
    %c0_i32_1 = arith.constant 0 : i32
    return %c0_i32, %c0_i32_0 : i32, i32
  }
  func.func @transform_6(%arg0: i32) -> (i32, i32) {
    %c0_i32 = arith.constant 0 : i32
    %c0_i32_0 = arith.constant 0 : i32
    %c0_i32_1 = arith.constant 0 : i32
    return %c0_i32, %c0_i32_0 : i32, i32
  }
  func.func @transform_7(%arg0: i32) -> (i32, i32) {
    %c0_i32 = arith.constant 0 : i32
    %c0_i32_0 = arith.constant 0 : i32
    return %arg0, %c0_i32 : i32, i32
  }
}

</mosaic_0001>

<llo_original>
// kernel: qnetwork_forward.1
$region0: #{qnetwork_forward.1}
  #allocation0 [shape = 'u32[]', space=smem, size = 0x4, offset = 0x4, fixed_abs, tag = 'smem constant byte address 0x4 - core index']
  #allocation1 [shape = 'u32[144,128]{1,0:T(1,128)}', space=vmem, size = 0x12000, scoped, tag = 'internal scratch']
  %s0 = inlined_call_operand.vmem [shape: f32[16,16], index: 0, kind: input, shape index: {}]
  %s1 = inlined_call_operand.vmem [shape: bf16[16,32], index: 1, kind: input, shape index: {}]
  %s2 = inlined_call_operand.vmem [shape: f32[1,32], index: 2, kind: input, shape index: {}]
  %s3 = inlined_call_operand.vmem [shape: bf16[32,32], index: 3, kind: input, shape index: {}]
  %s4 = inlined_call_operand.vmem [shape: f32[1,32], index: 4, kind: input, shape index: {}]
  %s5 = inlined_call_operand.vmem [shape: bf16[32,128], index: 5, kind: input, shape index: {}]
  %s6 = inlined_call_operand.vmem [shape: f32[1,128], index: 6, kind: input, shape index: {}]
  %s7 = inlined_call_operand.vmem [shape: f32[16,128], index: 7, kind: output, shape index: {}]
  %s8 = sld [smem:[#allocation0]]
  $region61: #{qnetwork_forward.1} parent=0
    _
  %s10 = ssub.s32 1, %s8
  %s11 = scalar_select 0, %s10, %s8
  loop: start=0, step=1, limit=4
  $region2: #{qnetwork_forward.1} parent=0 // loop_pre_header
    _
  $region3: #{qnetwork_forward.1} parent=0 // loop_header
    %s13 = sphi 0, %s17
    %p14 = scmp.ge.s32.totalorder %s13, 4
    %s23 = sphi 0, %s25
    %s26 = sphi 0, %s23
    %s27 = sphi 0, %s26
    %s43 = sphi 0, %s27
    %s47 = sphi 0, %s47
    %s49 = sphi 0, %s47
    %s50 = sphi 0, %s49
    %s64 = sphi 0, %s50
    %s68 = sphi 0, %s68
    %s70 = sphi 0, %s68
    %s71 = sphi 0, %s70
    %s85 = sphi 0, %s71
    %s89 = sphi 0, %s89
    %s91 = sphi 0, %s89
    %s92 = sphi 0, %s91
    %s106 = sphi 0, %s92
    %s110 = sphi 0, %s110
    %s112 = sphi 0, %s110
    %s113 = sphi 0, %s112
    %s127 = sphi 0, %s113
    %s131 = sphi 0, %s131
    %s133 = sphi 0, %s131
    %s134 = sphi 0, %s133
    %s148 = sphi 0, %s134
    %s152 = sphi 0, %s152
    %s154 = sphi 0, %s152
    %s155 = sphi 0, %s154
    %s169 = sphi 0, %s155
    %s175 = sphi 0, %s177
    %s178 = sphi 0, %s175
    %s179 = sphi 0, %s178
    %s195 = sphi 0, %s179
  $region4: #{qnetwork_forward.1} parent=0 // loop_header_branch
    %16 = sbr.rel (%p14) target = $region8
  $region5: #{qnetwork_forward.1} parent=0 // loop_body
    %s18 = ssub.s32 %s13, 1
    %s19 = ssub.s32 %s13, 2
    %s20 = sadd.s32 %s13, 1
    %s21 = ssub.s32 %s13, %s20
    %p22 = scmp.eq.s32.totalorder %s21, 0
    %s24 = sadd.s32 %s23, 1
    %s25 = scalar_select %p22, %s23, %s24
    %p28 = pneg %p22
    %p29 = scmp.eq.s32.totalorder %s13, 1
    %p30 = por %p28, %p29
    %p31 = scmp.ne.s32.totalorder %s23, %s26
    %p32 = scmp.eq.s32.totalorder %s13, 0
    %p33 = por %p31, %p32
    %p34 = scmp.ne.s32.totalorder %s23, %s26
    %p35 = scmp.eq.s32.totalorder %s18, 1
    %p36 = por %p34, %p35
    %p37 = scmp.ne.s32.totalorder %s26, %s27
    %p38 = scmp.eq.s32.totalorder %s18, 0
    %p39 = por %p37, %p38
    %p40 = scmp.ne.s32.totalorder %s26, %s27
    %p41 = scmp.eq.s32.totalorder %s19, 1
    %p42 = por %p40, %p41
    %p44 = scmp.ne.s32.totalorder %s27, %s43
    %p45 = scmp.eq.s32.totalorder %s19, 0
    %p46 = por %p44, %p45
    %s48 = sadd.s32 %s47, 1
    %p51 = scmp.eq.s32.totalorder %s13, 1
    %p52 = scmp.ne.s32.totalorder %s47, %s49
    %p53 = scmp.eq.s32.totalorder %s13, 0
    %p54 = por %p52, %p53
    %p55 = scmp.ne.s32.totalorder %s47, %s49
    %p56 = scmp.eq.s32.totalorder %s18, 1
    %p57 = por %p55, %p56
    %p58 = scmp.ne.s32.totalorder %s49, %s50
    %p59 = scmp.eq.s32.totalorder %s18, 0
    %p60 = por %p58, %p59
    %p61 = scmp.ne.s32.totalorder %s49, %s50
    %p62 = scmp.eq.s32.totalorder %s19, 1
    %p63 = por %p61, %p62
    %p65 = scmp.ne.s32.totalorder %s50, %s64
    %p66 = scmp.eq.s32.totalorder %s19, 0
    %p67 = por %p65, %p66
    %s69 = sadd.s32 %s68, 1
    %p72 = scmp.eq.s32.totalorder %s13, 1
    %p73 = scmp.ne.s32.totalorder %s68, %s70
    %p74 = scmp.eq.s32.totalorder %s13, 0
    %p75 = por %p73, %p74
    %p76 = scmp.ne.s32.totalorder %s68, %s70
    %p77 = scmp.eq.s32.totalorder %s18, 1
    %p78 = por %p76, %p77
    %p79 = scmp.ne.s32.totalorder %s70, %s71
    %p80 = scmp.eq.s32.totalorder %s18, 0
    %p81 = por %p79, %p80
    %p82 = scmp.ne.s32.totalorder %s70, %s71
    %p83 = scmp.eq.s32.totalorder %s19, 1
    %p84 = por %p82, %p83
    %p86 = scmp.ne.s32.totalorder %s71, %s85
    %p87 = scmp.eq.s32.totalorder %s19, 0
    %p88 = por %p86, %p87
    %s90 = sadd.s32 %s89, 1
    %p93 = scmp.eq.s32.totalorder %s13, 1
    %p94 = scmp.ne.s32.totalorder %s89, %s91
    %p95 = scmp.eq.s32.totalorder %s13, 0
    %p96 = por %p94, %p95
    %p97 = scmp.ne.s32.totalorder %s89, %s91
    %p98 = scmp.eq.s32.totalorder %s18, 1
    %p99 = por %p97, %p98
    %p100 = scmp.ne.s32.totalorder %s91, %s92
    %p101 = scmp.eq.s32.totalorder %s18, 0
    %p102 = por %p100, %p101
    %p103 = scmp.ne.s32.totalorder %s91, %s92
    %p104 = scmp.eq.s32.totalorder %s19, 1
    %p105 = por %p103, %p104
    %p107 = scmp.ne.s32.totalorder %s92, %s106
    %p108 = scmp.eq.s32.totalorder %s19, 0
    %p109 = por %p107, %p108
    %s111 = sadd.s32 %s110, 1
    %p114 = scmp.eq.s32.totalorder %s13, 1
    %p115 = scmp.ne.s32.totalorder %s110, %s112
    %p116 = scmp.eq.s32.totalorder %s13, 0
    %p117 = por %p115, %p116
    %p118 = scmp.ne.s32.totalorder %s110, %s112
    %p119 = scmp.eq.s32.totalorder %s18, 1
    %p120 = por %p118, %p119
    %p121 = scmp.ne.s32.totalorder %s112, %s113
    %p122 = scmp.eq.s32.totalorder %s18, 0
    %p123 = por %p121, %p122
    %p124 = scmp.ne.s32.totalorder %s112, %s113
    %p125 = scmp.eq.s32.totalorder %s19, 1
    %p126 = por %p124, %p125
    %p128 = scmp.ne.s32.totalorder %s113, %s127
    %p129 = scmp.eq.s32.totalorder %s19, 0
    %p130 = por %p128, %p129
    %s132 = sadd.s32 %s131, 1
    %p135 = scmp.eq.s32.totalorder %s13, 1
    %p136 = scmp.ne.s32.totalorder %s131, %s133
    %p137 = scmp.eq.s32.totalorder %s13, 0
    %p138 = por %p136, %p137
    %p139 = scmp.ne.s32.totalorder %s131, %s133
    %p140 = scmp.eq.s32.totalorder %s18, 1
    %p141 = por %p139, %p140
    %p142 = scmp.ne.s32.totalorder %s133, %s134
    %p143 = scmp.eq.s32.totalorder %s18, 0
    %p144 = por %p142, %p143
    %p145 = scmp.ne.s32.totalorder %s133, %s134
    %p146 = scmp.eq.s32.totalorder %s19, 1
    %p147 = por %p145, %p146
    %p149 = scmp.ne.s32.totalorder %s134, %s148
    %p150 = scmp.eq.s32.totalorder %s19, 0
    %p151 = por %p149, %p150
    %s153 = sadd.s32 %s152, 1
    %p156 = scmp.eq.s32.totalorder %s13, 1
    %p157 = scmp.ne.s32.totalorder %s152, %s154
    %p158 = scmp.eq.s32.totalorder %s13, 0
    %p159 = por %p157, %p158
    %p160 = scmp.ne.s32.totalorder %s152, %s154
    %p161 = scmp.eq.s32.totalorder %s18, 1
    %p162 = por %p160, %p161
    %p163 = scmp.ne.s32.totalorder %s154, %s155
    %p164 = scmp.eq.s32.totalorder %s18, 0
    %p165 = por %p163, %p164
    %p166 = scmp.ne.s32.totalorder %s154, %s155
    %p167 = scmp.eq.s32.totalorder %s19, 1
    %p168 = por %p166, %p167
    %p170 = scmp.ne.s32.totalorder %s155, %s169
    %p171 = scmp.eq.s32.totalorder %s19, 0
    %p172 = por %p170, %p171
    %s173 = ssub.s32 %s13, %s20
    %p174 = scmp.eq.s32.totalorder %s173, 0
    %s176 = sadd.s32 %s175, 1
    %s177 = scalar_select %p174, %s175, %s176
    %p180 = pneg %p174
    %p181 = scmp.eq.s32.totalorder %s13, 1
    %p182 = por %p180, %p181
    %p183 = scmp.ne.s32.totalorder %s175, %s178
    %p184 = scmp.eq.s32.totalorder %s13, 0
    %p185 = por %p183, %p184
    %p186 = scmp.ne.s32.totalorder %s175, %s178
    %p187 = scmp.eq.s32.totalorder %s18, 1
    %p188 = por %p186, %p187
    %p189 = scmp.ne.s32.totalorder %s178, %s179
    %p190 = scmp.eq.s32.totalorder %s18, 0
    %p191 = por %p189, %p190
    %p192 = scmp.ne.s32.totalorder %s178, %s179
    %p193 = scmp.eq.s32.totalorder %s19, 1
    %p194 = por %p192, %p193
    %p196 = scmp.ne.s32.totalorder %s179, %s195
    %p197 = scmp.eq.s32.totalorder %s19, 0
    %p198 = por %p196, %p197
    %p199 = scmp.le.s32.totalorder 1, %s13
    %p200 = scmp.lt.s32.totalorder %s13, 3
    %p201 = pnand %p199, %p200
    %p202 = pneg %p201
    // Predicated region
    $region9: #{qnetwork_forward.1} parent=5 // pred_check
      _
    $region10: #{qnetwork_forward.1} parent=5 // pred_check_branch
      %204 = sbr.rel (%p201) target = $region12
    $region11: #{qnetwork_forward.1} parent=5 // pred_region
      %s205 = ssub.s32 %s13, 1
      // Predicated region
      $region13: #{qnetwork_forward.1} parent=11 // pred_check
        %p206 = pneg %p60
      $region14: #{qnetwork_forward.1} parent=11 // pred_check_branch
        %208 = sbr.rel (%p206) target = $region16
      $region15: #{qnetwork_forward.1} parent=11 // pred_region
        _
      $region16: #{qnetwork_forward.1} parent=11 // pred_fallthru
        _
      // Predicated region
      $region17: #{qnetwork_forward.1} parent=11 // pred_check
        %p209 = pneg %p81
      $region18: #{qnetwork_forward.1} parent=11 // pred_check_branch
        %211 = sbr.rel (%p209) target = $region20
      $region19: #{qnetwork_forward.1} parent=11 // pred_region
        _
      $region20: #{qnetwork_forward.1} parent=11 // pred_fallthru
        _
      // Predicated region
      $region21: #{qnetwork_forward.1} parent=11 // pred_check
        %p212 = pneg %p102
      $region22: #{qnetwork_forward.1} parent=11 // pred_check_branch
        %214 = sbr.rel (%p212) target = $region24
      $region23: #{qnetwork_forward.1} parent=11 // pred_region
        _
      $region24: #{qnetwork_forward.1} parent=11 // pred_fallthru
        _
      // Predicated region
      $region25: #{qnetwork_forward.1} parent=11 // pred_check
        %p215 = pneg %p123
      $region26: #{qnetwork_forward.1} parent=11 // pred_check_branch
        %217 = sbr.rel (%p215) target = $region28
      $region27: #{qnetwork_forward.1} parent=11 // pred_region
        _
      $region28: #{qnetwork_forward.1} parent=11 // pred_fallthru
        _
      // Predicated region
      $region29: #{qnetwork_forward.1} parent=11 // pred_check
        %p218 = pneg %p144
      $region30: #{qnetwork_forward.1} parent=11 // pred_check_branch
        %220 = sbr.rel (%p218) target = $region32
      $region31: #{qnetwork_forward.1} parent=11 // pred_region
        _
      $region32: #{qnetwork_forward.1} parent=11 // pred_fallthru
        _
      // Predicated region
      $region33: #{qnetwork_forward.1} parent=11 // pred_check
        %p221 = pneg %p165
      $region34: #{qnetwork_forward.1} parent=11 // pred_check_branch
        %223 = sbr.rel (%p221) target = $region36
      $region35: #{qnetwork_forward.1} parent=11 // pred_region
        _
      $region36: #{qnetwork_forward.1} parent=11 // pred_fallthru
        _
    $region12: #{qnetwork_forward.1} parent=5 // pred_fallthru
      _
    %p224 = scmp.lt.s32.totalorder %s13, 2
    // Predicated region
    $region37: #{qnetwork_forward.1} parent=5 // pred_check
      %p225 = pneg %p224
    $region38: #{qnetwork_forward.1} parent=5 // pred_check_branch
      %227 = sbr.rel (%p225) target = $region40
    $region39: #{qnetwork_forward.1} parent=5 // pred_region
      // Predicated region
      $region41: #{qnetwork_forward.1} parent=39 // pred_check
        %p228 = pneg %p33
      $region42: #{qnetwork_forward.1} parent=39 // pred_check_branch
        %230 = sbr.rel (%p228) target = $region44
      $region43: #{qnetwork_forward.1} parent=39 // pred_region
        %p231 = scmp.lt.s32.totalorder %s13, 1
        %s232 = scalar_select %p231, %s13, 1
        %s233 = smul.addr %s232, 8
        %s234 = scalar_lea.vmem %s0, %s233
      $region44: #{qnetwork_forward.1} parent=39 // pred_fallthru
        _
    $region40: #{qnetwork_forward.1} parent=5 // pred_fallthru
      _
    %p235 = scmp.le.s32.totalorder 1, %s13
    %p236 = scmp.lt.s32.totalorder %s13, 3
    %p237 = pnand %p235, %p236
    %p238 = pneg %p237
    // Predicated region
    $region45: #{qnetwork_forward.1} parent=5 // pred_check
      _
    $region46: #{qnetwork_forward.1} parent=5 // pred_check_branch
      %240 = sbr.rel (%p237) target = $region48
    $region47: #{qnetwork_forward.1} parent=5 // pred_region
      %s241 = ssub.s32 %s13, 1
      %p242 = scmp.lt.s32.totalorder %s18, 1
      %s243 = scalar_select %p242, %s18, 1
      %s244 = smul.addr %s243, 8
      %s245 = scalar_lea.vmem %s0, %s244
      %p246 = pneg %p39
      %p247 = pneg %p36
      %p248 = pneg %p60
      %p249 = pneg %p57
      %p250 = pneg %p81
      %p251 = pneg %p78
      %p252 = pneg %p102
      %p253 = pneg %p99
      %p254 = pneg %p123
      %p255 = pneg %p120
      %p256 = pneg %p144
      %p257 = pneg %p141
      %p258 = pneg %p165
      %p259 = pneg %p162
      %p260 = pneg %p191
      %p261 = pneg %p188
      %p262 = scmp.lt.s32.totalorder %s18, 1
      %s263 = scalar_select %p262, %s18, 1
      %s264 = smul.addr %s263, 8
      %s265 = scalar_lea.vmem %s7, %s264
      %p266 = scmp.lt.s32.totalorder %s18, 1
      %s267 = scalar_select %p266, %s18, 1
      %s268 = smul.addr %s267, 8
      %s269 = scalar_lea.vmem %s0, %s268
      %p270 = scmp.lt.s32.totalorder %s18, 1
      %s271 = scalar_select %p270, %s18, 1
      %s272 = smul.addr %s271, 8
      %s273 = scalar_lea.vmem %s7, %s272
      %v275 = vld [vmem:[%s269] sm:$0xff]
      %v276 = vpack.c.bf16 %v275, %v275
      %v277 = vld [vmem:[%s1] sm:$0xf]
      %v278 = vld [vmem:[%s1 + $0x4] sm:$0xf]
      %v279 = vld [vmem:[%s2] sm:$0x1]
      %v281 = vlaneseq
      %v282 = vshrl.u32 %v281, 7
      %v283 = vsub.s32 0, %v282
      %v284 = vrot.slane %v279, %v283
      %v288 = vunpack.c.l.b16 %v277
      %v289 = vunpack.c.l.b16 %v278
      %v290 = vpack.c.b16 %v289, %v288
      %vm292 = vcmask 130048
      %v294 = vsel %vm292, %v276, 0
      %296 = vmatprep.subr.bf16.mxu0 0
      %297 = vmatpush1.bf16.msra.mxu0 0
      %298 = vmatprep.subr.bf16.mxu0 0
      %299 = vmatpush1.bf16.msra.mxu0 0
      %300 = vmatprep.subr.bf16.mxu0 0
      %301 = vmatpush1.bf16.msra.mxu0 0
      %302 = vmatprep.subr.bf16.mxu0 0
      %303 = vmatpush1.bf16.msra.mxu0 0
      %304 = vmatprep.subr.bf16.mxu0 0
      %305 = vmatpush1.bf16.msra.mxu0 0
      %306 = vmatprep.subr.bf16.mxu0 0
      %307 = vmatpush1.bf16.msra.mxu0 0
      %308 = vmatprep.subr.bf16.mxu0 0
      %309 = vmatpush1.bf16.msra.mxu0 0
      %310 = vmatprep.subr.bf16.mxu0 0
      %311 = vmatpush1.bf16.msra.mxu0 %v290
      %312 = vmatprep.subr.bf16.mxu0 0
      %313 = vmatpush2.bf16.msra.mxu0 0
      %314 = vmatprep.subr.bf16.mxu0 0
      %315 = vmatpush2.bf16.msra.mxu0 0
      %316 = vmatprep.subr.bf16.mxu0 0
      %317 = vmatpush2.bf16.msra.mxu0 0
      %318 = vmatprep.subr.bf16.mxu0 0
      %319 = vmatpush2.bf16.msra.mxu0 0
      %320 = vmatprep.subr.bf16.mxu0 0
      %321 = vmatpush2.bf16.msra.mxu0 0
      %322 = vmatprep.subr.bf16.mxu0 0
      %323 = vmatpush2.bf16.msra.mxu0 0
      %324 = vmatprep.subr.bf16.mxu0 0
      %325 = vmatpush2.bf16.msra.mxu0 0
      %326 = vmatprep.subr.bf16.mxu0 0
      %327 = vmatpush2.bf16.msra.mxu0 0
      %328 = vmatprep.mubr.bf16.mxu0 0
      %329 = vmatmul.mubr.bf16.gmra.mxu0 %v294
      %v330 = vpop.f32.mrf.mxu0
      %v331 = vadd.f32 %v284, %v330
      %v332 = vpop.f32.mrf.mxu0
      %v333 = vpop.f32.mrf.mxu0
      %v334 = vpop.f32.mrf.mxu0
      %335 = vdwg.mxu0
      %v336 = vmax.f32 %v331, 0.0
      %v337 = vpack.c.bf16 %v336, %v336
      %v338 = vld [vmem:[%s3] sm:$0xf]
      %v339 = vld [vmem:[%s3 + $0x4] sm:$0xf]
      %v340 = vld [vmem:[%s3 + $0x8] sm:$0xf]
      %v341 = vld [vmem:[%s3 + $0xc] sm:$0xf]
      %v342 = vld [vmem:[%s4] sm:$0x1]
      %v344 = vlaneseq
      %v345 = vshrl.u32 %v344, 7
      %v346 = vsub.s32 0, %v345
      %v347 = vrot.slane %v342, %v346
      %v353 = vunpack.c.l.b16 %v338
      %v354 = vunpack.c.l.b16 %v339
      %v355 = vunpack.c.l.b16 %v340
      %v356 = vunpack.c.l.b16 %v341
      %v357 = vpack.c.b16 %v354, %v353
      %v358 = vpack.c.b16 %v356, %v355
      %vm361 = vcmask 261120
      %v363 = vsel %vm361, %v337, 0
      %365 = vmatprep.subr.bf16.mxu0 0
      %366 = vmatpush1.bf16.msra.mxu0 0
      %367 = vmatprep.subr.bf16.mxu0 0
      %368 = vmatpush1.bf16.msra.mxu0 0
      %369 = vmatprep.subr.bf16.mxu0 0
      %370 = vmatpush1.bf16.msra.mxu0 0
      %371 = vmatprep.subr.bf16.mxu0 0
      %372 = vmatpush1.bf16.msra.mxu0 0
      %373 = vmatprep.subr.bf16.mxu0 0
      %374 = vmatpush1.bf16.msra.mxu0 0
      %375 = vmatprep.subr.bf16.mxu0 0
      %376 = vmatpush1.bf16.msra.mxu0 0
      %377 = vmatprep.subr.bf16.mxu0 0
      %378 = vmatpush1.bf16.msra.mxu0 %v358
      %379 = vmatprep.subr.bf16.mxu0 0
      %380 = vmatpush1.bf16.msra.mxu0 %v357
      %381 = vmatprep.subr.bf16.mxu0 0
      %382 = vmatpush2.bf16.msra.mxu0 0
      %383 = vmatprep.subr.bf16.mxu0 0
      %384 = vmatpush2.bf16.msra.mxu0 0
      %385 = vmatprep.subr.bf16.mxu0 0
      %386 = vmatpush2.bf16.msra.mxu0 0
      %387 = vmatprep.subr.bf16.mxu0 0
      %388 = vmatpush2.bf16.msra.mxu0 0
      %389 = vmatprep.subr.bf16.mxu0 0
      %390 = vmatpush2.bf16.msra.mxu0 0
      %391 = vmatprep.subr.bf16.mxu0 0
      %392 = vmatpush2.bf16.msra.mxu0 0
      %393 = vmatprep.subr.bf16.mxu0 0
      %394 = vmatpush2.bf16.msra.mxu0 0
      %395 = vmatprep.subr.bf16.mxu0 0
      %396 = vmatpush2.bf16.msra.mxu0 0
      %397 = vmatprep.mubr.bf16.mxu0 0
      %398 = vmatmul.mubr.bf16.gmra.mxu0 %v363
      %v399 = vpop.f32.mrf.mxu0
      %v400 = vadd.f32 %v347, %v399
      %v401 = vpop.f32.mrf.mxu0
      %v402 = vpop.f32.mrf.mxu0
      %v403 = vpop.f32.mrf.mxu0
      %404 = vdwg.mxu0
      %v405 = vmax.f32 %v400, 0.0
      %v406 = vpack.c.bf16 %v405, %v405
      %v407 = vld [vmem:[%s5] sm:$0xf]
      %v408 = vld [vmem:[%s5 + $0x4] sm:$0xf]
      %v409 = vld [vmem:[%s5 + $0x8] sm:$0xf]
      %v410 = vld [vmem:[%s5 + $0xc] sm:$0xf]
      %v411 = vld [vmem:[%s6] sm:$0x1]
      %v413 = vlaneseq
      %v414 = vshrl.u32 %v413, 7
      %v415 = vsub.s32 0, %v414
      %v416 = vrot.slane %v411, %v415
      %v422 = vunpack.c.l.b16 %v407
      %v423 = vunpack.c.l.b16 %v408
      %v424 = vunpack.c.l.b16 %v409
      %v425 = vunpack.c.l.b16 %v410
      %v426 = vpack.c.b16 %v423, %v422
      %v427 = vpack.c.b16 %v425, %v424
      %v431 = vsel %vm361, %v406, 0
      %433 = vmatprep.subr.bf16.mxu0 0
      %434 = vmatpush1.bf16.msra.mxu0 0
      %435 = vmatprep.subr.bf16.mxu0 0
      %436 = vmatpush1.bf16.msra.mxu0 0
      %437 = vmatprep.subr.bf16.mxu0 0
      %438 = vmatpush1.bf16.msra.mxu0 0
      %439 = vmatprep.subr.bf16.mxu0 0
      %440 = vmatpush1.bf16.msra.mxu0 0
      %441 = vmatprep.subr.bf16.mxu0 0
      %442 = vmatpush1.bf16.msra.mxu0 0
      %443 = vmatprep.subr.bf16.mxu0 0
      %444 = vmatpush1.bf16.msra.mxu0 0
      %445 = vmatprep.subr.bf16.mxu0 0
      %446 = vmatpush1.bf16.msra.mxu0 %v427
      %447 = vmatprep.subr.bf16.mxu0 0
      %448 = vmatpush1.bf16.msra.mxu0 %v426
      %449 = vmatprep.subr.bf16.mxu0 0
      %450 = vmatpush2.bf16.msra.mxu0 0
      %451 = vmatprep.subr.bf16.mxu0 0
      %452 = vmatpush2.bf16.msra.mxu0 0
      %453 = vmatprep.subr.bf16.mxu0 0
      %454 = vmatpush2.bf16.msra.mxu0 0
      %455 = vmatprep.subr.bf16.mxu0 0
      %456 = vmatpush2.bf16.msra.mxu0 0
      %457 = vmatprep.subr.bf16.mxu0 0
      %458 = vmatpush2.bf16.msra.mxu0 0
      %459 = vmatprep.subr.bf16.mxu0 0
      %460 = vmatpush2.bf16.msra.mxu0 0
      %461 = vmatprep.subr.bf16.mxu0 0
      %462 = vmatpush2.bf16.msra.mxu0 0
      %463 = vmatprep.subr.bf16.mxu0 0
      %464 = vmatpush2.bf16.msra.mxu0 0
      %465 = vmatprep.mubr.bf16.mxu0 0
      %466 = vmatmul.mubr.bf16.gmra.mxu0 %v431
      %v467 = vpop.f32.mrf.mxu0
      %v468 = vadd.f32 %v416, %v467
      %v469 = vpop.f32.mrf.mxu0
      %v470 = vpop.f32.mrf.mxu0
      %v471 = vpop.f32.mrf.mxu0
      %472 = vdwg.mxu0
      %473 = vst [vmem:[%s273] sm:$0xff] %v468
      %p474 = scmp.lt.s32.totalorder %s18, 1
      %s475 = scalar_select %p474, %s18, 1
      %s476 = smul.addr %s475, 8
      %s477 = scalar_lea.vmem %s7, %s476
      // Predicated region
      $region49: #{qnetwork_forward.1} parent=47 // pred_check
        %p478 = pneg %p188
      $region50: #{qnetwork_forward.1} parent=47 // pred_check_branch
        %480 = sbr.rel (%p478) target = $region52
      $region51: #{qnetwork_forward.1} parent=47 // pred_region
        _
      $region52: #{qnetwork_forward.1} parent=47 // pred_fallthru
        _
    $region48: #{qnetwork_forward.1} parent=5 // pred_fallthru
      _
    %p481 = scmp.le.s32.totalorder 2, %s13
    // Predicated region
    $region53: #{qnetwork_forward.1} parent=5 // pred_check
      %p482 = pneg %p481
    $region54: #{qnetwork_forward.1} parent=5 // pred_check_branch
      %484 = sbr.rel (%p482) target = $region56
    $region55: #{qnetwork_forward.1} parent=5 // pred_region
      %s485 = ssub.s32 %s13, 2
      // Predicated region
      $region57: #{qnetwork_forward.1} parent=55 // pred_check
        %p486 = pneg %p194
      $region58: #{qnetwork_forward.1} parent=55 // pred_check_branch
        %488 = sbr.rel (%p486) target = $region60
      $region59: #{qnetwork_forward.1} parent=55 // pred_region
        %p489 = scmp.lt.s32.totalorder %s19, 1
        %s490 = scalar_select %p489, %s19, 1
        %s491 = smul.addr %s490, 8
        %s492 = scalar_lea.vmem %s7, %s491
      $region60: #{qnetwork_forward.1} parent=55 // pred_fallthru
        _
    $region56: #{qnetwork_forward.1} parent=5 // pred_fallthru
      _
  $region6: #{qnetwork_forward.1} parent=0 // loop_footer
    %s17 = sadd.s32 1, %s13
  $region7: #{qnetwork_forward.1} parent=0 // loop_footer_branch
    %12 = sbr.rel target = $region3
  $region8: #{qnetwork_forward.1} parent=0 // loop_exit
    _

</llo_original>
